<compile_context>
chip_gen: v6e
topology: v6e:2x2x1
jax: 0.10.0
libtpu: 0.0.40
codegen_flags: <defaults>
</compile_context>

<pallas_src>
import math

import jax
import jax.numpy as jnp
from jax.experimental import pallas as pl
from jax.experimental.pallas import tpu as pltpu


def mlp_kernel(x_ref, w1_ref, b1_ref, w2_ref, b2_ref, w3_ref, b3_ref, o_ref):
    # Cast the streamed f32 x tile to bf16 in-kernel (wrapper no longer casts).
    x = x_ref[...].astype(jnp.bfloat16)
    # fc1 + relu   (bf16 x bf16 -> f32 accumulate on the MXU)
    h1 = jnp.dot(x, w1_ref[...], preferred_element_type=jnp.float32)
    h1 = jnp.maximum(h1 + b1_ref[...], 0.0)
    # fc2 + relu
    h2 = jnp.dot(h1.astype(jnp.bfloat16), w2_ref[...],
                 preferred_element_type=jnp.float32)
    h2 = jnp.maximum(h2 + b2_ref[...], 0.0)
    # fc3 (no activation) — kept in f32, negligible MXU cost, better precision.
    out = jnp.dot(h2, w3_ref[...], preferred_element_type=jnp.float32)
    o_ref[...] = (out + b3_ref[...]).astype(o_ref.dtype)


def _round_up(v, m):
    return ((v + m - 1) // m) * m


def net_forward(x, params, *, tm=512):
    """x: [B, 784] float32.  params: dict of w1,b1,w2,b2,w3,b3 (W stored [in,out])."""
    w1 = params["w1"].astype(jnp.bfloat16)
    w2 = params["w2"].astype(jnp.bfloat16)
    w3 = params["w3"]                       # f32: fc3 stays full precision
    b1, b2, b3 = params["b1"], params["b2"], params["b3"]

    B, in_dim = x.shape
    out_dim = w3.shape[1]
    h1_dim = w1.shape[1]
    h2_dim = w2.shape[1]

    # Batch tile: multiple of 8 (sublane), <= 1024 (v5e scoped-VMEM headroom),
    # never larger than the (rounded-up) batch, and small enough that the grid
    # has >= 2 steps so v7x's two TensorCores can split the "parallel" axis.
    tm = _round_up(max(8, min(int(tm), 1024)), 8)
    tm = min(tm, _round_up(B, 8))
    if B > 8:
        tm = min(tm, _round_up(pl.cdiv(B, 2), 8))
    grid_m = pl.cdiv(B, tm)

    flops = 2 * B * (in_dim * h1_dim + h1_dim * h2_dim + h2_dim * out_dim)
    bytes_accessed = (
        B * in_dim * 4                      # x stream (f32)
        + w1.size * 2 + w2.size * 2         # bf16 weights
        + w3.size * 4
        + b1.size * 4 + b2.size * 4 + b3.size * 4
        + B * out_dim * 4                   # output
    )
    cost = pl.CostEstimate(flops=flops, transcendentals=0,
                           bytes_accessed=bytes_accessed)

    out = pl.pallas_call(
        mlp_kernel,
        out_shape=jax.ShapeDtypeStruct((B, out_dim), jnp.float32),
        grid_spec=pltpu.PrefetchScalarGridSpec(
            num_scalar_prefetch=0,
            grid=(grid_m,),
            in_specs=[
                # x: streamed (tm, 784) f32 tiles, pipelined against compute.
                # Last block may be partial; OOB rows are garbage but their
                # outputs are masked on store (rows are independent).
                pl.BlockSpec((tm, in_dim), lambda i: (i, 0)),
                # weights / biases: full arrays, same block every step
                # => VMEM-resident, DMA'd once.
                pl.BlockSpec(w1.shape, lambda i: (0, 0)),
                pl.BlockSpec(b1.shape, lambda i: (0, 0)),
                pl.BlockSpec(w2.shape, lambda i: (0, 0)),
                pl.BlockSpec(b2.shape, lambda i: (0, 0)),
                pl.BlockSpec(w3.shape, lambda i: (0, 0)),
                pl.BlockSpec(b3.shape, lambda i: (0, 0)),
            ],
            out_specs=pl.BlockSpec((tm, out_dim), lambda i: (i, 0)),
        ),
        compiler_params=pltpu.CompilerParams(
            dimension_semantics=("parallel",),
        ),
        cost_estimate=cost,
    )(x, w1, b1, w2, b2, w3, b3)

    return out


def init_params(key):
    """Deterministic init mimicking nn.Linear's U(-1/sqrt(fan_in), 1/sqrt(fan_in))."""
    dims = [(28 * 28, 256), (256, 64), (64, 10)]
    params = {}
    for i, (fan_in, fan_out) in enumerate(dims, start=1):
        key, kw, kb = jax.random.split(key, 3)
        bound = 1.0 / math.sqrt(fan_in)
        params[f"w{i}"] = jax.random.uniform(
            kw, (fan_in, fan_out), jnp.float32, minval=-bound, maxval=bound)
        params[f"b{i}"] = jax.random.uniform(
            kb, (1, fan_out), jnp.float32, minval=-bound, maxval=bound)
    return params


def reference_forward(x, params):
    h1 = jnp.maximum(x @ params["w1"] + params["b1"], 0.0)
    h2 = jnp.maximum(h1 @ params["w2"] + params["b2"], 0.0)
    return h2 @ params["w3"] + params["b3"]


if __name__ == "__main__":
    key = jax.random.PRNGKey(0)
    key, kx = jax.random.split(key)

    # Small, deliberately non-multiple-of-8 batch to exercise partial last
    # blocks (masked stores) without any wrapper-side padding.
    batch = 37
    x = jax.random.normal(kx, (batch, 28 * 28), jnp.float32)
    params = init_params(key)

    ref = reference_forward(x, params)     # pure f32 reference

    # Explicit small tile -> 3 grid steps (16 + 16 + 5 masked).
    out_small = jax.block_until_ready(net_forward(x, params, tm=16))
    # Default tile -> clamped to 24 (>= 2 grid steps for the v7x dual-TC rule).
    out_default = jax.block_until_ready(net_forward(x, params))

    for out in (out_small, out_default):
        assert out.shape == (batch, 10), out.shape
        # bf16 inputs to fc1/fc2 with f32 accumulation: loosen tolerance vs f32.
        assert jnp.allclose(out, ref, atol=2e-2, rtol=2e-2), (
            float(jnp.max(jnp.abs(out - ref))))

    print("KERNEL_OK")
</pallas_src>

<mosaic_0001>
module attributes {stable_mosaic.version = 11 : i64} {
  func.func @mlp_kernel(%arg0: i32, %arg1: memref<16x784xf32, #tpu.memory_space<vmem>>, %arg2: memref<784x256xbf16, #tpu.memory_space<vmem>>, %arg3: memref<1x256xf32, #tpu.memory_space<vmem>>, %arg4: memref<256x64xbf16, #tpu.memory_space<vmem>>, %arg5: memref<1x64xf32, #tpu.memory_space<vmem>>, %arg6: memref<64x10xf32, #tpu.memory_space<vmem>>, %arg7: memref<1x10xf32, #tpu.memory_space<vmem>>, %arg8: memref<16x10xf32, #tpu.memory_space<vmem>>) attributes {dimension_semantics = [#tpu.dimension_semantics<parallel>], iteration_bounds = array<i64: 3>, scalar_prefetch = 0 : i64, scratch_operands = 0 : i64, tpu.core_type = #tpu.core_type<tc>, window_params = [{transform_indices = @transform_0, window_bounds = array<i64: 16, 784>}, {pipeline_mode = #tpu.pipeline_mode<synchronous>, transform_indices = @transform_1, window_bounds = array<i64: 784, 256>}, {pipeline_mode = #tpu.pipeline_mode<synchronous>, transform_indices = @transform_2, window_bounds = array<i64: 1, 256>}, {pipeline_mode = #tpu.pipeline_mode<synchronous>, transform_indices = @transform_3, window_bounds = array<i64: 256, 64>}, {pipeline_mode = #tpu.pipeline_mode<synchronous>, transform_indices = @transform_4, window_bounds = array<i64: 1, 64>}, {pipeline_mode = #tpu.pipeline_mode<synchronous>, transform_indices = @transform_5, window_bounds = array<i64: 64, 10>}, {pipeline_mode = #tpu.pipeline_mode<synchronous>, transform_indices = @transform_6, window_bounds = array<i64: 1, 10>}, {transform_indices = @transform_7, window_bounds = array<i64: 16, 10>}]} {
    %c0 = arith.constant 0 : index
    %c0_0 = arith.constant 0 : index
    %0 = vector.load %arg1[%c0, %c0_0] : memref<16x784xf32, #tpu.memory_space<vmem>>, vector<16x784xf32>
    %1 = arith.truncf %0 : vector<16x784xf32> to vector<16x784xbf16>
    %c0_1 = arith.constant 0 : index
    %c0_2 = arith.constant 0 : index
    %2 = vector.load %arg2[%c0_1, %c0_2] : memref<784x256xbf16, #tpu.memory_space<vmem>>, vector<784x256xbf16>
    %cst = arith.constant dense<0.000000e+00> : vector<16x256xf32>
    %3 = tpu.matmul %1, %2, %cst {dimension_numbers = #tpu.dot_dimension_numbers<[1], [0], [0], [1], [0, 0, 1, 1], [], []>} : vector<16x784xbf16>, vector<784x256xbf16>, vector<16x256xf32> -> vector<16x256xf32>
    %c0_3 = arith.constant 0 : index
    %c0_4 = arith.constant 0 : index
    %4 = vector.load %arg3[%c0_3, %c0_4] : memref<1x256xf32, #tpu.memory_space<vmem>>, vector<1x256xf32>
    %5 = vector.broadcast %4 : vector<1x256xf32> to vector<16x256xf32>
    %6 = arith.addf %3, %5 : vector<16x256xf32>
    %cst_5 = arith.constant 0.000000e+00 : f32
    %7 = vector.broadcast %cst_5 : f32 to vector<16x256xf32>
    %8 = arith.maximumf %6, %7 : vector<16x256xf32>
    %9 = arith.truncf %8 : vector<16x256xf32> to vector<16x256xbf16>
    %c0_6 = arith.constant 0 : index
    %c0_7 = arith.constant 0 : index
    %10 = vector.load %arg4[%c0_6, %c0_7] : memref<256x64xbf16, #tpu.memory_space<vmem>>, vector<256x64xbf16>
    %cst_8 = arith.constant dense<0.000000e+00> : vector<16x64xf32>
    %11 = tpu.matmul %9, %10, %cst_8 {dimension_numbers = #tpu.dot_dimension_numbers<[1], [0], [0], [1], [0, 0, 1, 1], [], []>} : vector<16x256xbf16>, vector<256x64xbf16>, vector<16x64xf32> -> vector<16x64xf32>
    %c0_9 = arith.constant 0 : index
    %c0_10 = arith.constant 0 : index
    %12 = vector.load %arg5[%c0_9, %c0_10] : memref<1x64xf32, #tpu.memory_space<vmem>>, vector<1x64xf32>
    %13 = vector.broadcast %12 : vector<1x64xf32> to vector<16x64xf32>
    %14 = arith.addf %11, %13 : vector<16x64xf32>
    %cst_11 = arith.constant 0.000000e+00 : f32
    %15 = vector.broadcast %cst_11 : f32 to vector<16x64xf32>
    %16 = arith.maximumf %14, %15 : vector<16x64xf32>
    %c0_12 = arith.constant 0 : index
    %c0_13 = arith.constant 0 : index
    %17 = vector.load %arg6[%c0_12, %c0_13] : memref<64x10xf32, #tpu.memory_space<vmem>>, vector<64x10xf32>
    %cst_14 = arith.constant dense<0.000000e+00> : vector<16x10xf32>
    %18 = tpu.matmul %16, %17, %cst_14 {dimension_numbers = #tpu.dot_dimension_numbers<[1], [0], [0], [1], [0, 0, 1, 1], [], []>} : vector<16x64xf32>, vector<64x10xf32>, vector<16x10xf32> -> vector<16x10xf32>
    %c0_15 = arith.constant 0 : index
    %c0_16 = arith.constant 0 : index
    %19 = vector.load %arg7[%c0_15, %c0_16] : memref<1x10xf32, #tpu.memory_space<vmem>>, vector<1x10xf32>
    %20 = vector.broadcast %19 : vector<1x10xf32> to vector<16x10xf32>
    %21 = arith.addf %18, %20 : vector<16x10xf32>
    %c0_17 = arith.constant 0 : index
    %c0_18 = arith.constant 0 : index
    %22 = vector.load %arg8[%c0_17, %c0_18] : memref<16x10xf32, #tpu.memory_space<vmem>>, vector<16x10xf32>
    tpu.vector_store %arg8[%c0_17, %c0_18], %21 {strides = array<i32>} : memref<16x10xf32, #tpu.memory_space<vmem>>, vector<16x10xf32>,
    return
  }
  func.func @transform_0(%arg0: i32) -> (i32, i32) {
    %c0_i32 = arith.constant 0 : i32
    %c0_i32_0 = arith.constant 0 : i32
    return %arg0, %c0_i32 : i32, i32
  }
  func.func @transform_1(%arg0: i32) -> (i32, i32) {
    %c0_i32 = arith.constant 0 : i32
    %c0_i32_0 = arith.constant 0 : i32
    %c0_i32_1 = arith.constant 0 : i32
    return %c0_i32, %c0_i32_0 : i32, i32
  }
  func.func @transform_2(%arg0: i32) -> (i32, i32) {
    %c0_i32 = arith.constant 0 : i32
    %c0_i32_0 = arith.constant 0 : i32
    %c0_i32_1 = arith.constant 0 : i32
    return %c0_i32, %c0_i32_0 : i32, i32
  }
  func.func @transform_3(%arg0: i32) -> (i32, i32) {
    %c0_i32 = arith.constant 0 : i32
    %c0_i32_0 = arith.constant 0 : i32
    %c0_i32_1 = arith.constant 0 : i32
    return %c0_i32, %c0_i32_0 : i32, i32
  }
  func.func @transform_4(%arg0: i32) -> (i32, i32) {
    %c0_i32 = arith.constant 0 : i32
    %c0_i32_0 = arith.constant 0 : i32
    %c0_i32_1 = arith.constant 0 : i32
    return %c0_i32, %c0_i32_0 : i32, i32
  }
  func.func @transform_5(%arg0: i32) -> (i32, i32) {
    %c0_i32 = arith.constant 0 : i32
    %c0_i32_0 = arith.constant 0 : i32
    %c0_i32_1 = arith.constant 0 : i32
    return %c0_i32, %c0_i32_0 : i32, i32
  }
  func.func @transform_6(%arg0: i32) -> (i32, i32) {
    %c0_i32 = arith.constant 0 : i32
    %c0_i32_0 = arith.constant 0 : i32
    %c0_i32_1 = arith.constant 0 : i32
    return %c0_i32, %c0_i32_0 : i32, i32
  }
  func.func @transform_7(%arg0: i32) -> (i32, i32) {
    %c0_i32 = arith.constant 0 : i32
    %c0_i32_0 = arith.constant 0 : i32
    return %arg0, %c0_i32 : i32, i32
  }
}

</mosaic_0001>

<llo_original>
// kernel: tpu_custom_call.1
$region0: #{tpu_custom_call.1}
  #allocation0 [shape = 'u32[]', space=smem, size = 0x4, offset = 0x4, fixed_abs, tag = 'smem constant byte address 0x4 - core index']
  #allocation1 [shape = 'u32[144,128]{1,0:T(1,128)}', space=vmem, size = 0x12000, scoped, tag = 'internal scratch']
  %s0 = inlined_call_operand.hbm [shape: f32[37,784], index: 0, kind: input, shape index: {}]
  %s1 = inlined_call_operand.hbm [shape: bf16[784,256], index: 1, kind: input, shape index: {}]
  %s2 = inlined_call_operand.vmem [shape: f32[1,256], index: 2, kind: input, shape index: {}]
  %s3 = inlined_call_operand.vmem [shape: bf16[256,64], index: 3, kind: input, shape index: {}]
  %s4 = inlined_call_operand.vmem [shape: f32[1,64], index: 4, kind: input, shape index: {}]
  %s5 = inlined_call_operand.vmem [shape: f32[64,10], index: 5, kind: input, shape index: {}]
  %s6 = inlined_call_operand.vmem [shape: f32[1,10], index: 6, kind: input, shape index: {}]
  %s7 = inlined_call_operand.vmem [shape: f32[37,10], index: 7, kind: output, shape index: {}]
  %s8 = sld [smem:[#allocation0]]
  $region117: #{tpu_custom_call.1} parent=0
    _
  %s10 = ssub.s32 1, %s8
  %s11 = scalar_select 0, %s10, %s8
  $region1: #{tpu_custom_call.1} parent=0
    #allocation2 [shape = 'u8[114688]{0}', space=vmem, size = 0x1c000, scoped, tag = 'input window, operand 0']
    #allocation3 [shape = 's32[2]{0}', space=sflag, size = 0x8, scoped, tag = 'scoped memory for tpu_custom_call.1']
    #allocation4 [shape = 'u8[401408]{0}', space=vmem, size = 0x62000, scoped, tag = 'input window, operand 1, single buffered']
    #allocation5 [shape = 's32[1]{0}', space=sflag, size = 0x4, scoped, tag = 'scoped memory for tpu_custom_call.1']
    #allocation6 [shape = 'u8[16384]{0}', space=vmem, size = 0x4000, scoped, tag = 'output window, operand 0']
    %12 = vsyncpa [#allocation3], 0
    %s13 = scalar_lea.sflag [#allocation3], 1
    %14 = vsyncpa %s13, 0
    %15 = vsyncpa [#allocation5], 0
    loop: start=0, step=1, limit=5
    $region2: #{tpu_custom_call.1} parent=1 // loop_pre_header
      _
    $region3: #{tpu_custom_call.1} parent=1 // loop_header
      %s17 = sphi 0, %s21
      %p18 = scmp.ge.s32.totalorder %s17, 5
      %s27 = sphi 0, %s29
      %s30 = sphi 0, %s27
      %s31 = sphi 0, %s30
      %s47 = sphi 0, %s31
      %s51 = sphi 0, %s51
      %s53 = sphi 0, %s51
      %s54 = sphi 0, %s53
      %s68 = sphi 0, %s54
      %s72 = sphi 0, %s72
      %s74 = sphi 0, %s72
      %s75 = sphi 0, %s74
      %s89 = sphi 0, %s75
      %s93 = sphi 0, %s93
      %s95 = sphi 0, %s93
      %s96 = sphi 0, %s95
      %s110 = sphi 0, %s96
      %s114 = sphi 0, %s114
      %s116 = sphi 0, %s114
      %s117 = sphi 0, %s116
      %s131 = sphi 0, %s117
      %s135 = sphi 0, %s135
      %s137 = sphi 0, %s135
      %s138 = sphi 0, %s137
      %s152 = sphi 0, %s138
      %s156 = sphi 0, %s156
      %s158 = sphi 0, %s156
      %s159 = sphi 0, %s158
      %s173 = sphi 0, %s159
      %s179 = sphi 0, %s181
      %s182 = sphi 0, %s179
      %s183 = sphi 0, %s182
      %s199 = sphi 0, %s183
    $region4: #{tpu_custom_call.1} parent=1 // loop_header_branch
      %20 = sbr.rel (%p18) target = $region8
    $region5: #{tpu_custom_call.1} parent=1 // loop_body
      %s22 = ssub.s32 %s17, 1
      %s23 = ssub.s32 %s17, 2
      %s24 = sadd.s32 %s17, 1
      %s25 = ssub.s32 %s17, %s24
      %p26 = scmp.eq.s32.totalorder %s25, 0
      %s28 = sadd.s32 %s27, 1
      %s29 = scalar_select %p26, %s27, %s28
      %p32 = pneg %p26
      %p33 = scmp.eq.s32.totalorder %s17, 2
      %p34 = por %p32, %p33
      %p35 = scmp.ne.s32.totalorder %s27, %s30
      %p36 = scmp.eq.s32.totalorder %s17, 0
      %p37 = por %p35, %p36
      %p38 = scmp.ne.s32.totalorder %s27, %s30
      %p39 = scmp.eq.s32.totalorder %s22, 2
      %p40 = por %p38, %p39
      %p41 = scmp.ne.s32.totalorder %s30, %s31
      %p42 = scmp.eq.s32.totalorder %s22, 0
      %p43 = por %p41, %p42
      %p44 = scmp.ne.s32.totalorder %s30, %s31
      %p45 = scmp.eq.s32.totalorder %s23, 2
      %p46 = por %p44, %p45
      %p48 = scmp.ne.s32.totalorder %s31, %s47
      %p49 = scmp.eq.s32.totalorder %s23, 0
      %p50 = por %p48, %p49
      %s52 = sadd.s32 %s51, 1
      %p55 = scmp.eq.s32.totalorder %s17, 2
      %p56 = scmp.ne.s32.totalorder %s51, %s53
      %p57 = scmp.eq.s32.totalorder %s17, 0
      %p58 = por %p56, %p57
      %p59 = scmp.ne.s32.totalorder %s51, %s53
      %p60 = scmp.eq.s32.totalorder %s22, 2
      %p61 = por %p59, %p60
      %p62 = scmp.ne.s32.totalorder %s53, %s54
      %p63 = scmp.eq.s32.totalorder %s22, 0
      %p64 = por %p62, %p63
      %p65 = scmp.ne.s32.totalorder %s53, %s54
      %p66 = scmp.eq.s32.totalorder %s23, 2
      %p67 = por %p65, %p66
      %p69 = scmp.ne.s32.totalorder %s54, %s68
      %p70 = scmp.eq.s32.totalorder %s23, 0
      %p71 = por %p69, %p70
      %s73 = sadd.s32 %s72, 1
      %p76 = scmp.eq.s32.totalorder %s17, 2
      %p77 = scmp.ne.s32.totalorder %s72, %s74
      %p78 = scmp.eq.s32.totalorder %s17, 0
      %p79 = por %p77, %p78
      %p80 = scmp.ne.s32.totalorder %s72, %s74
      %p81 = scmp.eq.s32.totalorder %s22, 2
      %p82 = por %p80, %p81
      %p83 = scmp.ne.s32.totalorder %s74, %s75
      %p84 = scmp.eq.s32.totalorder %s22, 0
      %p85 = por %p83, %p84
      %p86 = scmp.ne.s32.totalorder %s74, %s75
      %p87 = scmp.eq.s32.totalorder %s23, 2
      %p88 = por %p86, %p87
      %p90 = scmp.ne.s32.totalorder %s75, %s89
      %p91 = scmp.eq.s32.totalorder %s23, 0
      %p92 = por %p90, %p91
      %s94 = sadd.s32 %s93, 1
      %p97 = scmp.eq.s32.totalorder %s17, 2
      %p98 = scmp.ne.s32.totalorder %s93, %s95
      %p99 = scmp.eq.s32.totalorder %s17, 0
      %p100 = por %p98, %p99
      %p101 = scmp.ne.s32.totalorder %s93, %s95
      %p102 = scmp.eq.s32.totalorder %s22, 2
      %p103 = por %p101, %p102
      %p104 = scmp.ne.s32.totalorder %s95, %s96
      %p105 = scmp.eq.s32.totalorder %s22, 0
      %p106 = por %p104, %p105
      %p107 = scmp.ne.s32.totalorder %s95, %s96
      %p108 = scmp.eq.s32.totalorder %s23, 2
      %p109 = por %p107, %p108
      %p111 = scmp.ne.s32.totalorder %s96, %s110
      %p112 = scmp.eq.s32.totalorder %s23, 0
      %p113 = por %p111, %p112
      %s115 = sadd.s32 %s114, 1
      %p118 = scmp.eq.s32.totalorder %s17, 2
      %p119 = scmp.ne.s32.totalorder %s114, %s116
      %p120 = scmp.eq.s32.totalorder %s17, 0
      %p121 = por %p119, %p120
      %p122 = scmp.ne.s32.totalorder %s114, %s116
      %p123 = scmp.eq.s32.totalorder %s22, 2
      %p124 = por %p122, %p123
      %p125 = scmp.ne.s32.totalorder %s116, %s117
      %p126 = scmp.eq.s32.totalorder %s22, 0
      %p127 = por %p125, %p126
      %p128 = scmp.ne.s32.totalorder %s116, %s117
      %p129 = scmp.eq.s32.totalorder %s23, 2
      %p130 = por %p128, %p129
      %p132 = scmp.ne.s32.totalorder %s117, %s131
      %p133 = scmp.eq.s32.totalorder %s23, 0
      %p134 = por %p132, %p133
      %s136 = sadd.s32 %s135, 1
      %p139 = scmp.eq.s32.totalorder %s17, 2
      %p140 = scmp.ne.s32.totalorder %s135, %s137
      %p141 = scmp.eq.s32.totalorder %s17, 0
      %p142 = por %p140, %p141
      %p143 = scmp.ne.s32.totalorder %s135, %s137
      %p144 = scmp.eq.s32.totalorder %s22, 2
      %p145 = por %p143, %p144
      %p146 = scmp.ne.s32.totalorder %s137, %s138
      %p147 = scmp.eq.s32.totalorder %s22, 0
      %p148 = por %p146, %p147
      %p149 = scmp.ne.s32.totalorder %s137, %s138
      %p150 = scmp.eq.s32.totalorder %s23, 2
      %p151 = por %p149, %p150
      %p153 = scmp.ne.s32.totalorder %s138, %s152
      %p154 = scmp.eq.s32.totalorder %s23, 0
      %p155 = por %p153, %p154
      %s157 = sadd.s32 %s156, 1
      %p160 = scmp.eq.s32.totalorder %s17, 2
      %p161 = scmp.ne.s32.totalorder %s156, %s158
      %p162 = scmp.eq.s32.totalorder %s17, 0
      %p163 = por %p161, %p162
      %p164 = scmp.ne.s32.totalorder %s156, %s158
      %p165 = scmp.eq.s32.totalorder %s22, 2
      %p166 = por %p164, %p165
      %p167 = scmp.ne.s32.totalorder %s158, %s159
      %p168 = scmp.eq.s32.totalorder %s22, 0
      %p169 = por %p167, %p168
      %p170 = scmp.ne.s32.totalorder %s158, %s159
      %p171 = scmp.eq.s32.totalorder %s23, 2
      %p172 = por %p170, %p171
      %p174 = scmp.ne.s32.totalorder %s159, %s173
      %p175 = scmp.eq.s32.totalorder %s23, 0
      %p176 = por %p174, %p175
      %s177 = ssub.s32 %s17, %s24
      %p178 = scmp.eq.s32.totalorder %s177, 0
      %s180 = sadd.s32 %s179, 1
      %s181 = scalar_select %p178, %s179, %s180
      %p184 = pneg %p178
      %p185 = scmp.eq.s32.totalorder %s17, 2
      %p186 = por %p184, %p185
      %p187 = scmp.ne.s32.totalorder %s179, %s182
      %p188 = scmp.eq.s32.totalorder %s17, 0
      %p189 = por %p187, %p188
      %p190 = scmp.ne.s32.totalorder %s179, %s182
      %p191 = scmp.eq.s32.totalorder %s22, 2
      %p192 = por %p190, %p191
      %p193 = scmp.ne.s32.totalorder %s182, %s183
      %p194 = scmp.eq.s32.totalorder %s22, 0
      %p195 = por %p193, %p194
      %p196 = scmp.ne.s32.totalorder %s182, %s183
      %p197 = scmp.eq.s32.totalorder %s23, 2
      %p198 = por %p196, %p197
      %p200 = scmp.ne.s32.totalorder %s183, %s199
      %p201 = scmp.eq.s32.totalorder %s23, 0
      %p202 = por %p200, %p201
      %p203 = scmp.le.s32.totalorder 1, %s17
      %p204 = scmp.lt.s32.totalorder %s17, 4
      %p205 = pnand %p203, %p204
      %p206 = pneg %p205
      // Predicated region
      $region9: #{tpu_custom_call.1} parent=5 // pred_check
        _
      $region10: #{tpu_custom_call.1} parent=5 // pred_check_branch
        %208 = sbr.rel (%p205) target = $region12
      $region11: #{tpu_custom_call.1} parent=5 // pred_region
        %s209 = ssub.s32 %s17, 1
        // Predicated region
        $region13: #{tpu_custom_call.1} parent=11 // pred_check
          %p210 = pneg %p64
        $region14: #{tpu_custom_call.1} parent=11 // pred_check_branch
          %212 = sbr.rel (%p210) target = $region16
        $region15: #{tpu_custom_call.1} parent=11 // pred_region
          %s214 = ssub.s32 12544, 12544
          %215 = vsyncadd [#allocation5], %s214
          %s216 = sshll.u32 [#allocation4], 4
          %s217 = int_to_ptr.vmem [resolvable:$true] %s216
          %222 = dma.hbm_to_vmem [thread:$0]  %s1, 12544, %s217, [#allocation5], 128, 128, 8
        $region16: #{tpu_custom_call.1} parent=11 // pred_fallthru
          _
        // Predicated region
        $region17: #{tpu_custom_call.1} parent=11 // pred_check
          %p223 = pneg %p85
        $region18: #{tpu_custom_call.1} parent=11 // pred_check_branch
          %225 = sbr.rel (%p223) target = $region20
        $region19: #{tpu_custom_call.1} parent=11 // pred_region
          _
        $region20: #{tpu_custom_call.1} parent=11 // pred_fallthru
          _
        // Predicated region
        $region21: #{tpu_custom_call.1} parent=11 // pred_check
          %p226 = pneg %p106
        $region22: #{tpu_custom_call.1} parent=11 // pred_check_branch
          %228 = sbr.rel (%p226) target = $region24
        $region23: #{tpu_custom_call.1} parent=11 // pred_region
          _
        $region24: #{tpu_custom_call.1} parent=11 // pred_fallthru
          _
        // Predicated region
        $region25: #{tpu_custom_call.1} parent=11 // pred_check
          %p229 = pneg %p127
        $region26: #{tpu_custom_call.1} parent=11 // pred_check_branch
          %231 = sbr.rel (%p229) target = $region28
        $region27: #{tpu_custom_call.1} parent=11 // pred_region
          _
        $region28: #{tpu_custom_call.1} parent=11 // pred_fallthru
          _
        // Predicated region
        $region29: #{tpu_custom_call.1} parent=11 // pred_check
          %p232 = pneg %p148
        $region30: #{tpu_custom_call.1} parent=11 // pred_check_branch
          %234 = sbr.rel (%p232) target = $region32
        $region31: #{tpu_custom_call.1} parent=11 // pred_region
          _
        $region32: #{tpu_custom_call.1} parent=11 // pred_fallthru
          _
        // Predicated region
        $region33: #{tpu_custom_call.1} parent=11 // pred_check
          %p235 = pneg %p169
        $region34: #{tpu_custom_call.1} parent=11 // pred_check_branch
          %237 = sbr.rel (%p235) target = $region36
        $region35: #{tpu_custom_call.1} parent=11 // pred_region
          _
        $region36: #{tpu_custom_call.1} parent=11 // pred_fallthru
          _
      $region12: #{tpu_custom_call.1} parent=5 // pred_fallthru
        _
      %p238 = scmp.lt.s32.totalorder %s17, 3
      // Predicated region
      $region37: #{tpu_custom_call.1} parent=5 // pred_check
        %p239 = pneg %p238
      $region38: #{tpu_custom_call.1} parent=5 // pred_check_branch
        %241 = sbr.rel (%p239) target = $region40
      $region39: #{tpu_custom_call.1} parent=5 // pred_region
        // Predicated region
        $region41: #{tpu_custom_call.1} parent=39 // pred_check
          %p242 = pneg %p37
        $region42: #{tpu_custom_call.1} parent=39 // pred_check_branch
          %244 = sbr.rel (%p242) target = $region44
        $region43: #{tpu_custom_call.1} parent=39 // pred_region
          %s245 = sand.u32 %s27, 1
          %s246 = scalar_lea.sflag [#allocation3], %s245
          %s247 = sand.u32 %s27, 1
          %s248 = smul.addr %s247, 112
          %s249 = scalar_lea.vmem [#allocation2], %s248
          %s250 = smul.u32 2, %s17
          %s251 = ssub.s32 5, %s250
          %p252 = scmp.lt.s32.totalorder %s251, 2
          %s253 = scalar_select %p252, %s251, 2
          %s254 = smul.u32 128, %s253
          %s255 = smul.u32 %s254, 7
          %s257 = ssub.s32 1792, %s255
          %258 = vsyncadd %s246, %s257
          %p259 = scmp.ne.s32.totalorder 0, %s255
          %s260 = smul.addr %s250, 7
          %s261 = smul.addr %s260, 128
          %s262 = scalar_lea.hbm %s0, %s261
          %s263 = smul.u32 56, %s253
          %s264 = sshll.u32 %s249, 4
          %s265 = int_to_ptr.vmem [resolvable:$true] %s264
          %s266 = sshll.u32 %s263, 4
          %270 = dma.hbm_to_vmem [thread:$0]  (%p259), %s262, %s266, %s265, %s246, 896, 896, 56
        $region44: #{tpu_custom_call.1} parent=39 // pred_fallthru
          _
      $region40: #{tpu_custom_call.1} parent=5 // pred_fallthru
        _
      %p271 = scmp.le.s32.totalorder 1, %s17
      %p272 = scmp.lt.s32.totalorder %s17, 4
      %p273 = pnand %p271, %p272
      %p274 = pneg %p273
      // Predicated region
      $region45: #{tpu_custom_call.1} parent=5 // pred_check
        _
      $region46: #{tpu_custom_call.1} parent=5 // pred_check_branch
        %276 = sbr.rel (%p273) target = $region48
      $region47: #{tpu_custom_call.1} parent=5 // pred_region
        %s277 = ssub.s32 %s17, 1
        %s278 = sand.u32 %s30, 1
        %s279 = scalar_lea.sflag [#allocation3], %s278
        %s280 = sand.u32 %s30, 1
        %s281 = smul.addr %s280, 112
        %s282 = scalar_lea.vmem [#allocation2], %s281
        // Predicated region
        $region49: #{tpu_custom_call.1} parent=47 // pred_check
          %p283 = pneg %p43
        $region50: #{tpu_custom_call.1} parent=47 // pred_check_branch
          %285 = sbr.rel (%p283) target = $region52
        $region51: #{tpu_custom_call.1} parent=47 // pred_region
          %286 = dma.done %s279, 1792
        $region52: #{tpu_custom_call.1} parent=47 // pred_fallthru
          _
        // Predicated region
        $region53: #{tpu_custom_call.1} parent=47 // pred_check
          %p287 = pneg %p64
        $region54: #{tpu_custom_call.1} parent=47 // pred_check_branch
          %289 = sbr.rel (%p287) target = $region56
        $region55: #{tpu_custom_call.1} parent=47 // pred_region
          %290 = dma.done [#allocation5], 12544
        $region56: #{tpu_custom_call.1} parent=47 // pred_fallthru
          _
        %s291 = sand.u32 %s30, 1
        %s292 = scalar_lea.sflag [#allocation3], %s291
        %s293 = sand.u32 %s30, 1
        %s294 = smul.addr %s293, 112
        %s295 = scalar_lea.vmem [#allocation2], %s294
        %p296 = pneg %p43
        %p297 = pneg %p40
        %p298 = pneg %p64
        %p299 = pneg %p61
        %p300 = pneg %p85
        %p301 = pneg %p82
        %p302 = pneg %p106
        %p303 = pneg %p103
        %p304 = pneg %p127
        %p305 = pneg %p124
        %p306 = pneg %p148
        %p307 = pneg %p145
        %p308 = pneg %p169
        %p309 = pneg %p166
        %p310 = pneg %p195
        %p311 = pneg %p192
        %s312 = sand.u32 %s182, 1
        %s313 = sand.u32 %s182, 1
        %s314 = smul.addr %s313, 16
        %s315 = scalar_lea.vmem [#allocation6], %s314
        %s316 = smul.u32 2, %s22
        %s317 = ssub.s32 5, %s316
        %p318 = scmp.lt.s32.totalorder %s317, 2
        %s319 = scalar_select %p318, %s317, 2
        %s320 = smul.u32 128, %s319
        %s321 = smul.u32 %s320, 7
        %s322 = smul.u32 2, %s22
        %s323 = ssub.s32 5, %s322
        %p324 = scmp.lt.s32.totalorder %s323, 2
        %s325 = scalar_select %p324, %s323, 2
        %s326 = smul.u32 128, %s325
        %v328 = vld [vmem:[%s282] sm:$0xff]
        %v329 = vld [vmem:[%s282 + $0x8] sm:$0xff]
        %v330 = vld [vmem:[%s282 + $0x10] sm:$0xff]
        %v331 = vld [vmem:[%s282 + $0x18] sm:$0xff]
        %v332 = vld [vmem:[%s282 + $0x20] sm:$0xff]
        %v333 = vld [vmem:[%s282 + $0x28] sm:$0xff]
        %v334 = vld [vmem:[%s282 + $0x30] sm:$0xff]
        %v335 = vld [vmem:[%s282 + $0x38] sm:$0xff]
        %v336 = vld [vmem:[%s282 + $0x40] sm:$0xff]
        %v337 = vld [vmem:[%s282 + $0x48] sm:$0xff]
        %v338 = vld [vmem:[%s282 + $0x50] sm:$0xff]
        %v339 = vld [vmem:[%s282 + $0x58] sm:$0xff]
        %v340 = vld [vmem:[%s282 + $0x60] sm:$0xff]
        %v341 = vld [vmem:[%s282 + $0x68] sm:$0xff]
        %v342 = vpack.c.bf16 %v335, %v328
        %v343 = vpack.c.bf16 %v336, %v329
        %v344 = vpack.c.bf16 %v337, %v330
        %v345 = vpack.c.bf16 %v338, %v331
        %v346 = vpack.c.bf16 %v339, %v332
        %v347 = vpack.c.bf16 %v340, %v333
        %v348 = vpack.c.bf16 %v341, %v334
        %v349 = vld [vmem:[#allocation4] sm:$0xff]
        %v350 = vld [vmem:[#allocation4 + $0x8] sm:$0xff]
        %v351 = vld [vmem:[#allocation4 + $0x10] sm:$0xff]
        %v352 = vld [vmem:[#allocation4 + $0x18] sm:$0xff]
        %v353 = vld [vmem:[#allocation4 + $0x20] sm:$0xff]
        %v354 = vld [vmem:[#allocation4 + $0x28] sm:$0xff]
        %v355 = vld [vmem:[#allocation4 + $0x30] sm:$0xff]
        %v356 = vld [vmem:[#allocation4 + $0x38] sm:$0xff]
        %v357 = vld [vmem:[#allocation4 + $0x40] sm:$0xff]
        %v358 = vld [vmem:[#allocation4 + $0x48] sm:$0xff]
        %v359 = vld [vmem:[#allocation4 + $0x50] sm:$0xff]
        %v360 = vld [vmem:[#allocation4 + $0x58] sm:$0xff]
        %v361 = vld [vmem:[#allocation4 + $0x60] sm:$0xff]
        %v362 = vld [vmem:[#allocation4 + $0x68] sm:$0xff]
        %v363 = vld [vmem:[#allocation4 + $0x70] sm:$0xff]
        %v364 = vld [vmem:[#allocation4 + $0x78] sm:$0xff]
        %v365 = vld [vmem:[#allocation4 + $0x80] sm:$0xff]
        %v366 = vld [vmem:[#allocation4 + $0x88] sm:$0xff]
        %v367 = vld [vmem:[#allocation4 + $0x90] sm:$0xff]
        %v368 = vld [vmem:[#allocation4 + $0x98] sm:$0xff]
        %v369 = vld [vmem:[#allocation4 + $0xa0] sm:$0xff]
        %v370 = vld [vmem:[#allocation4 + $0xa8] sm:$0xff]
        %v371 = vld [vmem:[#allocation4 + $0xb0] sm:$0xff]
        %v372 = vld [vmem:[#allocation4 + $0xb8] sm:$0xff]
        %v373 = vld [vmem:[#allocation4 + $0xc0] sm:$0xff]
        %v374 = vld [vmem:[#allocation4 + $0xc8] sm:$0xff]
        %v375 = vld [vmem:[#allocation4 + $0xd0] sm:$0xff]
        %v376 = vld [vmem:[#allocation4 + $0xd8] sm:$0xff]
        %v377 = vld [vmem:[#allocation4 + $0xe0] sm:$0xff]
        %v378 = vld [vmem:[#allocation4 + $0xe8] sm:$0xff]
        %v379 = vld [vmem:[#allocation4 + $0xf0] sm:$0xff]
        %v380 = vld [vmem:[#allocation4 + $0xf8] sm:$0xff]
        %v381 = vld [vmem:[#allocation4 + $0x100] sm:$0xff]
        %v382 = vld [vmem:[#allocation4 + $0x108] sm:$0xff]
        %v383 = vld [vmem:[#allocation4 + $0x110] sm:$0xff]
        %v384 = vld [vmem:[#allocation4 + $0x118] sm:$0xff]
        %v385 = vld [vmem:[#allocation4 + $0x120] sm:$0xff]
        %v386 = vld [vmem:[#allocation4 + $0x128] sm:$0xff]
        %v387 = vld [vmem:[#allocation4 + $0x130] sm:$0xff]
        %v388 = vld [vmem:[#allocation4 + $0x138] sm:$0xff]
        %v389 = vld [vmem:[#allocation4 + $0x140] sm:$0xff]
        %v390 = vld [vmem:[#allocation4 + $0x148] sm:$0xff]
        %v391 = vld [vmem:[#allocation4 + $0x150] sm:$0xff]
        %v392 = vld [vmem:[#allocation4 + $0x158] sm:$0xff]
        %v393 = vld [vmem:[#allocation4 + $0x160] sm:$0xff]
        %v394 = vld [vmem:[#allocation4 + $0x168] sm:$0xff]
        %v395 = vld [vmem:[#allocation4 + $0x170] sm:$0xff]
        %v396 = vld [vmem:[#allocation4 + $0x178] sm:$0xff]
        %v397 = vld [vmem:[#allocation4 + $0x180] sm:$0xff]
        %v398 = vld [vmem:[#allocation4 + $0x188] sm:$0xff]
        %v399 = vld [vmem:[#allocation4 + $0x190] sm:$0xff]
        %v400 = vld [vmem:[#allocation4 + $0x198] sm:$0xff]
        %v401 = vld [vmem:[#allocation4 + $0x1a0] sm:$0xff]
        %v402 = vld [vmem:[#allocation4 + $0x1a8] sm:$0xff]
        %v403 = vld [vmem:[#allocation4 + $0x1b0] sm:$0xff]
        %v404 = vld [vmem:[#allocation4 + $0x1b8] sm:$0xff]
        %v405 = vld [vmem:[#allocation4 + $0x1c0] sm:$0xff]
        %v406 = vld [vmem:[#allocation4 + $0x1c8] sm:$0xff]
        %v407 = vld [vmem:[#allocation4 + $0x1d0] sm:$0xff]
        %v408 = vld [vmem:[#allocation4 + $0x1d8] sm:$0xff]
        %v409 = vld [vmem:[#allocation4 + $0x1e0] sm:$0xff]
        %v410 = vld [vmem:[#allocation4 + $0x1e8] sm:$0xff]
        %v411 = vld [vmem:[#allocation4 + $0x1f0] sm:$0xff]
        %v412 = vld [vmem:[#allocation4 + $0x1f8] sm:$0xff]
        %v413 = vld [vmem:[#allocation4 + $0x200] sm:$0xff]
        %v414 = vld [vmem:[#allocation4 + $0x208] sm:$0xff]
        %v415 = vld [vmem:[#allocation4 + $0x210] sm:$0xff]
        %v416 = vld [vmem:[#allocation4 + $0x218] sm:$0xff]
        %v417 = vld [vmem:[#allocation4 + $0x220] sm:$0xff]
        %v418 = vld [vmem:[#allocation4 + $0x228] sm:$0xff]
        %v419 = vld [vmem:[#allocation4 + $0x230] sm:$0xff]
        %v420 = vld [vmem:[#allocation4 + $0x238] sm:$0xff]
        %v421 = vld [vmem:[#allocation4 + $0x240] sm:$0xff]
        %v422 = vld [vmem:[#allocation4 + $0x248] sm:$0xff]
        %v423 = vld [vmem:[#allocation4 + $0x250] sm:$0xff]
        %v424 = vld [vmem:[#allocation4 + $0x258] sm:$0xff]
        %v425 = vld [vmem:[#allocation4 + $0x260] sm:$0xff]
        %v426 = vld [vmem:[#allocation4 + $0x268] sm:$0xff]
        %v427 = vld [vmem:[#allocation4 + $0x270] sm:$0xff]
        %v428 = vld [vmem:[#allocation4 + $0x278] sm:$0xff]
        %v429 = vld [vmem:[#allocation4 + $0x280] sm:$0xff]
        %v430 = vld [vmem:[#allocation4 + $0x288] sm:$0xff]
        %v431 = vld [vmem:[#allocation4 + $0x290] sm:$0xff]
        %v432 = vld [vmem:[#allocation4 + $0x298] sm:$0xff]
        %v433 = vld [vmem:[#allocation4 + $0x2a0] sm:$0xff]
        %v434 = vld [vmem:[#allocation4 + $0x2a8] sm:$0xff]
        %v435 = vld [vmem:[#allocation4 + $0x2b0] sm:$0xff]
        %v436 = vld [vmem:[#allocation4 + $0x2b8] sm:$0xff]
        %v437 = vld [vmem:[#allocation4 + $0x2c0] sm:$0xff]
        %v438 = vld [vmem:[#allocation4 + $0x2c8] sm:$0xff]
        %v439 = vld [vmem:[#allocation4 + $0x2d0] sm:$0xff]
        %v440 = vld [vmem:[#allocation4 + $0x2d8] sm:$0xff]
        %v441 = vld [vmem:[#allocation4 + $0x2e0] sm:$0xff]
        %v442 = vld [vmem:[#allocation4 + $0x2e8] sm:$0xff]
        %v443 = vld [vmem:[#allocation4 + $0x2f0] sm:$0xff]
        %v444 = vld [vmem:[#allocation4 + $0x2f8] sm:$0xff]
        %v445 = vld [vmem:[#allocation4 + $0x300] sm:$0xff]
        %v446 = vld [vmem:[#allocation4 + $0x308] sm:$0xff]
        %v447 = vld [vmem:[%s2] sm:$0x3]
        %v449 = vlaneseq
        %v450 = vshrl.u32 %v449, 7
        %v451 = vsub.s32 0, %v450
        %v452 = vrot.slane %v447, %v451
        %v453 = vlaneseq
        %v454 = vshrl.u32 %v453, 7
        %v455 = vsub.s32 1, %v454
        %v456 = vrot.slane %v447, %v455
        %v557 = vunpack.c.l.b16 %v349
        %v558 = vunpack.c.h.b16 %v349
        %v559 = vunpack.c.l.b16 %v350
        %v560 = vunpack.c.h.b16 %v350
        %v561 = vunpack.c.l.b16 %v351
        %v562 = vunpack.c.h.b16 %v351
        %v563 = vunpack.c.l.b16 %v352
        %v564 = vunpack.c.h.b16 %v352
        %v565 = vunpack.c.l.b16 %v353
        %v566 = vunpack.c.h.b16 %v353
        %v567 = vunpack.c.l.b16 %v354
        %v568 = vunpack.c.h.b16 %v354
        %v569 = vunpack.c.l.b16 %v355
        %v570 = vunpack.c.h.b16 %v355
        %v571 = vunpack.c.l.b16 %v356
        %v572 = vunpack.c.h.b16 %v356
        %v573 = vunpack.c.l.b16 %v357
        %v574 = vunpack.c.h.b16 %v357
        %v575 = vunpack.c.l.b16 %v358
        %v576 = vunpack.c.h.b16 %v358
        %v577 = vunpack.c.l.b16 %v359
        %v578 = vunpack.c.h.b16 %v359
        %v579 = vunpack.c.l.b16 %v360
        %v580 = vunpack.c.h.b16 %v360
        %v581 = vunpack.c.l.b16 %v361
        %v582 = vunpack.c.h.b16 %v361
        %v583 = vunpack.c.l.b16 %v362
        %v584 = vunpack.c.h.b16 %v362
        %v585 = vunpack.c.l.b16 %v363
        %v586 = vunpack.c.h.b16 %v363
        %v587 = vunpack.c.l.b16 %v364
        %v588 = vunpack.c.h.b16 %v364
        %v589 = vunpack.c.l.b16 %v365
        %v590 = vunpack.c.h.b16 %v365
        %v591 = vunpack.c.l.b16 %v366
        %v592 = vunpack.c.h.b16 %v366
        %v593 = vunpack.c.l.b16 %v367
        %v594 = vunpack.c.h.b16 %v367
        %v595 = vunpack.c.l.b16 %v368
        %v596 = vunpack.c.h.b16 %v368
        %v597 = vunpack.c.l.b16 %v369
        %v598 = vunpack.c.h.b16 %v369
        %v599 = vunpack.c.l.b16 %v370
        %v600 = vunpack.c.h.b16 %v370
        %v601 = vunpack.c.l.b16 %v371
        %v602 = vunpack.c.h.b16 %v371
        %v603 = vunpack.c.l.b16 %v372
        %v604 = vunpack.c.h.b16 %v372
        %v605 = vunpack.c.l.b16 %v373
        %v606 = vunpack.c.h.b16 %v373
        %v607 = vunpack.c.l.b16 %v374
        %v608 = vunpack.c.h.b16 %v374
        %v609 = vunpack.c.l.b16 %v375
        %v610 = vunpack.c.h.b16 %v375
        %v611 = vunpack.c.l.b16 %v376
        %v612 = vunpack.c.h.b16 %v376
        %v613 = vunpack.c.l.b16 %v377
        %v614 = vunpack.c.h.b16 %v377
        %v615 = vunpack.c.l.b16 %v378
        %v616 = vunpack.c.h.b16 %v378
        %v617 = vunpack.c.l.b16 %v379
        %v618 = vunpack.c.h.b16 %v379
        %v619 = vunpack.c.l.b16 %v380
        %v620 = vunpack.c.h.b16 %v380
        %v621 = vunpack.c.l.b16 %v381
        %v622 = vunpack.c.h.b16 %v381
        %v623 = vunpack.c.l.b16 %v382
        %v624 = vunpack.c.h.b16 %v382
        %v625 = vunpack.c.l.b16 %v383
        %v626 = vunpack.c.h.b16 %v383
        %v627 = vunpack.c.l.b16 %v384
        %v628 = vunpack.c.h.b16 %v384
        %v629 = vunpack.c.l.b16 %v385
        %v630 = vunpack.c.h.b16 %v385
        %v631 = vunpack.c.l.b16 %v386
        %v632 = vunpack.c.h.b16 %v386
        %v633 = vunpack.c.l.b16 %v387
        %v634 = vunpack.c.h.b16 %v387
        %v635 = vunpack.c.l.b16 %v388
        %v636 = vunpack.c.h.b16 %v388
        %v637 = vunpack.c.l.b16 %v389
        %v638 = vunpack.c.h.b16 %v389
        %v639 = vunpack.c.l.b16 %v390
        %v640 = vunpack.c.h.b16 %v390
        %v641 = vunpack.c.l.b16 %v391
        %v642 = vunpack.c.h.b16 %v391
        %v643 = vunpack.c.l.b16 %v392
        %v644 = vunpack.c.h.b16 %v392
        %v645 = vunpack.c.l.b16 %v393
        %v646 = vunpack.c.h.b16 %v393
        %v647 = vunpack.c.l.b16 %v394
        %v648 = vunpack.c.h.b16 %v394
        %v649 = vunpack.c.l.b16 %v395
        %v650 = vunpack.c.h.b16 %v395
        %v651 = vunpack.c.l.b16 %v396
        %v652 = vunpack.c.h.b16 %v396
        %v653 = vunpack.c.l.b16 %v397
        %v654 = vunpack.c.h.b16 %v397
        %v655 = vunpack.c.l.b16 %v398
        %v656 = vunpack.c.h.b16 %v398
        %v657 = vunpack.c.l.b16 %v399
        %v658 = vunpack.c.h.b16 %v399
        %v659 = vunpack.c.l.b16 %v400
        %v660 = vunpack.c.h.b16 %v400
        %v661 = vunpack.c.l.b16 %v401
        %v662 = vunpack.c.h.b16 %v401
        %v663 = vunpack.c.l.b16 %v402
        %v664 = vunpack.c.h.b16 %v402
        %v665 = vunpack.c.l.b16 %v403
        %v666 = vunpack.c.h.b16 %v403
        %v667 = vunpack.c.l.b16 %v404
        %v668 = vunpack.c.h.b16 %v404
        %v669 = vunpack.c.l.b16 %v405
        %v670 = vunpack.c.h.b16 %v405
        %v671 = vunpack.c.l.b16 %v406
        %v672 = vunpack.c.h.b16 %v406
        %v673 = vunpack.c.l.b16 %v407
        %v674 = vunpack.c.h.b16 %v407
        %v675 = vunpack.c.l.b16 %v408
        %v676 = vunpack.c.h.b16 %v408
        %v677 = vunpack.c.l.b16 %v409
        %v678 = vunpack.c.h.b16 %v409
        %v679 = vunpack.c.l.b16 %v410
        %v680 = vunpack.c.h.b16 %v410
        %v681 = vunpack.c.l.b16 %v411
        %v682 = vunpack.c.h.b16 %v411
        %v683 = vunpack.c.l.b16 %v412
        %v684 = vunpack.c.h.b16 %v412
        %v685 = vunpack.c.l.b16 %v413
        %v686 = vunpack.c.h.b16 %v413
        %v687 = vunpack.c.l.b16 %v414
        %v688 = vunpack.c.h.b16 %v414
        %v689 = vunpack.c.l.b16 %v415
        %v690 = vunpack.c.h.b16 %v415
        %v691 = vunpack.c.l.b16 %v416
        %v692 = vunpack.c.h.b16 %v416
        %v693 = vunpack.c.l.b16 %v417
        %v694 = vunpack.c.h.b16 %v417
        %v695 = vunpack.c.l.b16 %v418
        %v696 = vunpack.c.h.b16 %v418
        %v697 = vunpack.c.l.b16 %v419
        %v698 = vunpack.c.h.b16 %v419
        %v699 = vunpack.c.l.b16 %v420
        %v700 = vunpack.c.h.b16 %v420
        %v701 = vunpack.c.l.b16 %v421
        %v702 = vunpack.c.h.b16 %v421
        %v703 = vunpack.c.l.b16 %v422
        %v704 = vunpack.c.h.b16 %v422
        %v705 = vunpack.c.l.b16 %v423
        %v706 = vunpack.c.h.b16 %v423
        %v707 = vunpack.c.l.b16 %v424
        %v708 = vunpack.c.h.b16 %v424
        %v709 = vunpack.c.l.b16 %v425
        %v710 = vunpack.c.h.b16 %v425
        %v711 = vunpack.c.l.b16 %v426
        %v712 = vunpack.c.h.b16 %v426
        %v713 = vunpack.c.l.b16 %v427
        %v714 = vunpack.c.h.b16 %v427
        %v715 = vunpack.c.l.b16 %v428
        %v716 = vunpack.c.h.b16 %v428
        %v717 = vunpack.c.l.b16 %v429
        %v718 = vunpack.c.h.b16 %v429
        %v719 = vunpack.c.l.b16 %v430
        %v720 = vunpack.c.h.b16 %v430
        %v721 = vunpack.c.l.b16 %v431
        %v722 = vunpack.c.h.b16 %v431
        %v723 = vunpack.c.l.b16 %v432
        %v724 = vunpack.c.h.b16 %v432
        %v725 = vunpack.c.l.b16 %v433
        %v726 = vunpack.c.h.b16 %v433
        %v727 = vunpack.c.l.b16 %v434
        %v728 = vunpack.c.h.b16 %v434
        %v729 = vunpack.c.l.b16 %v435
        %v730 = vunpack.c.h.b16 %v435
        %v731 = vunpack.c.l.b16 %v436
        %v732 = vunpack.c.h.b16 %v436
        %v733 = vunpack.c.l.b16 %v437
        %v734 = vunpack.c.h.b16 %v437
        %v735 = vunpack.c.l.b16 %v438
        %v736 = vunpack.c.h.b16 %v438
        %v737 = vunpack.c.l.b16 %v439
        %v738 = vunpack.c.h.b16 %v439
        %v739 = vunpack.c.l.b16 %v440
        %v740 = vunpack.c.h.b16 %v440
        %v741 = vunpack.c.l.b16 %v441
        %v742 = vunpack.c.h.b16 %v441
        %v743 = vunpack.c.l.b16 %v442
        %v744 = vunpack.c.h.b16 %v442
        %v745 = vunpack.c.l.b16 %v443
        %v746 = vunpack.c.h.b16 %v443
        %v747 = vunpack.c.l.b16 %v444
        %v748 = vunpack.c.h.b16 %v444
        %v749 = vunpack.c.l.b16 %v445
        %v750 = vunpack.c.h.b16 %v445
        %v751 = vunpack.c.l.b16 %v446
        %v752 = vunpack.c.h.b16 %v446
        %v753 = vpack.c.b16 %v559, %v557
        %v754 = vpack.c.b16 %v560, %v558
        %v755 = vpack.c.b16 %v563, %v561
        %v756 = vpack.c.b16 %v564, %v562
        %v757 = vpack.c.b16 %v567, %v565
        %v758 = vpack.c.b16 %v568, %v566
        %v759 = vpack.c.b16 %v571, %v569
        %v760 = vpack.c.b16 %v572, %v570
        %v761 = vpack.c.b16 %v575, %v573
        %v762 = vpack.c.b16 %v576, %v574
        %v763 = vpack.c.b16 %v579, %v577
        %v764 = vpack.c.b16 %v580, %v578
        %v765 = vpack.c.b16 %v583, %v581
        %v766 = vpack.c.b16 %v584, %v582
        %v767 = vpack.c.b16 %v587, %v585
        %v768 = vpack.c.b16 %v588, %v586
        %v769 = vpack.c.b16 %v591, %v589
        %v770 = vpack.c.b16 %v592, %v590
        %v771 = vpack.c.b16 %v595, %v593
        %v772 = vpack.c.b16 %v596, %v594
        %v773 = vpack.c.b16 %v599, %v597
        %v774 = vpack.c.b16 %v600, %v598
        %v775 = vpack.c.b16 %v603, %v601
        %v776 = vpack.c.b16 %v604, %v602
        %v777 = vpack.c.b16 %v607, %v605
        %v778 = vpack.c.b16 %v608, %v606
        %v779 = vpack.c.b16 %v611, %v609
        %v780 = vpack.c.b16 %v612, %v610
        %v781 = vpack.c.b16 %v615, %v613
        %v782 = vpack.c.b16 %v616, %v614
        %v783 = vpack.c.b16 %v619, %v617
        %v784 = vpack.c.b16 %v620, %v618
        %v785 = vpack.c.b16 %v623, %v621
        %v786 = vpack.c.b16 %v624, %v622
        %v787 = vpack.c.b16 %v627, %v625
        %v788 = vpack.c.b16 %v628, %v626
        %v789 = vpack.c.b16 %v631, %v629
        %v790 = vpack.c.b16 %v632, %v630
        %v791 = vpack.c.b16 %v635, %v633
        %v792 = vpack.c.b16 %v636, %v634
        %v793 = vpack.c.b16 %v639, %v637
        %v794 = vpack.c.b16 %v640, %v638
        %v795 = vpack.c.b16 %v643, %v641
        %v796 = vpack.c.b16 %v644, %v642
        %v797 = vpack.c.b16 %v647, %v645
        %v798 = vpack.c.b16 %v648, %v646
        %v799 = vpack.c.b16 %v651, %v649
        %v800 = vpack.c.b16 %v652, %v650
        %v801 = vpack.c.b16 %v655, %v653
        %v802 = vpack.c.b16 %v656, %v654
        %v803 = vpack.c.b16 %v659, %v657
        %v804 = vpack.c.b16 %v660, %v658
        %v805 = vpack.c.b16 %v663, %v661
        %v806 = vpack.c.b16 %v664, %v662
        %v807 = vpack.c.b16 %v667, %v665
        %v808 = vpack.c.b16 %v668, %v666
        %v809 = vpack.c.b16 %v671, %v669
        %v810 = vpack.c.b16 %v672, %v670
        %v811 = vpack.c.b16 %v675, %v673
        %v812 = vpack.c.b16 %v676, %v674
        %v813 = vpack.c.b16 %v679, %v677
        %v814 = vpack.c.b16 %v680, %v678
        %v815 = vpack.c.b16 %v683, %v681
        %v816 = vpack.c.b16 %v684, %v682
        %v817 = vpack.c.b16 %v687, %v685
        %v818 = vpack.c.b16 %v688, %v686
        %v819 = vpack.c.b16 %v691, %v689
        %v820 = vpack.c.b16 %v692, %v690
        %v821 = vpack.c.b16 %v695, %v693
        %v822 = vpack.c.b16 %v696, %v694
        %v823 = vpack.c.b16 %v699, %v697
        %v824 = vpack.c.b16 %v700, %v698
        %v825 = vpack.c.b16 %v703, %v701
        %v826 = vpack.c.b16 %v704, %v702
        %v827 = vpack.c.b16 %v707, %v705
        %v828 = vpack.c.b16 %v708, %v706
        %v829 = vpack.c.b16 %v711, %v709
        %v830 = vpack.c.b16 %v712, %v710
        %v831 = vpack.c.b16 %v715, %v713
        %v832 = vpack.c.b16 %v716, %v714
        %v833 = vpack.c.b16 %v719, %v717
        %v834 = vpack.c.b16 %v720, %v718
        %v835 = vpack.c.b16 %v723, %v721
        %v836 = vpack.c.b16 %v724, %v722
        %v837 = vpack.c.b16 %v727, %v725
        %v838 = vpack.c.b16 %v728, %v726
        %v839 = vpack.c.b16 %v731, %v729
        %v840 = vpack.c.b16 %v732, %v730
        %v841 = vpack.c.b16 %v735, %v733
        %v842 = vpack.c.b16 %v736, %v734
        %v843 = vpack.c.b16 %v739, %v737
        %v844 = vpack.c.b16 %v740, %v738
        %v845 = vpack.c.b16 %v743, %v741
        %v846 = vpack.c.b16 %v744, %v742
        %v847 = vpack.c.b16 %v747, %v745
        %v848 = vpack.c.b16 %v748, %v746
        %v849 = vpack.c.b16 %v751, %v749
        %v850 = vpack.c.b16 %v752, %v750
        %vm949 = vcmask 130048
        %v951 = vsel %vm949, %v348, 0
        %953 = vmatprep.subr.bf16.mxu0 %v768
        %954 = vmatpush1.bf16.msra.mxu0 %v767
        %955 = vmatprep.subr.bf16.mxu0 %v766
        %956 = vmatpush1.bf16.msra.mxu0 %v765
        %957 = vmatprep.subr.bf16.mxu0 %v764
        %958 = vmatpush1.bf16.msra.mxu0 %v763
        %959 = vmatprep.subr.bf16.mxu0 %v762
        %960 = vmatpush1.bf16.msra.mxu0 %v761
        %961 = vmatprep.subr.bf16.mxu0 %v760
        %962 = vmatpush1.bf16.msra.mxu0 %v759
        %963 = vmatprep.subr.bf16.mxu0 %v758
        %964 = vmatpush1.bf16.msra.mxu0 %v757
        %965 = vmatprep.subr.bf16.mxu0 %v756
        %966 = vmatpush1.bf16.msra.mxu0 %v755
        %967 = vmatprep.subr.bf16.mxu0 %v754
        %968 = vmatpush1.bf16.msra.mxu0 %v753
        %969 = vmatprep.subr.bf16.mxu0 %v784
        %970 = vmatpush2.bf16.msra.mxu0 %v783
        %971 = vmatprep.subr.bf16.mxu0 %v782
        %972 = vmatpush2.bf16.msra.mxu0 %v781
        %973 = vmatprep.subr.bf16.mxu0 %v780
        %974 = vmatpush2.bf16.msra.mxu0 %v779
        %975 = vmatprep.subr.bf16.mxu0 %v778
        %976 = vmatpush2.bf16.msra.mxu0 %v777
        %977 = vmatprep.subr.bf16.mxu0 %v776
        %978 = vmatpush2.bf16.msra.mxu0 %v775
        %979 = vmatprep.subr.bf16.mxu0 %v774
        %980 = vmatpush2.bf16.msra.mxu0 %v773
        %981 = vmatprep.subr.bf16.mxu0 %v772
        %982 = vmatpush2.bf16.msra.mxu0 %v771
        %983 = vmatprep.subr.bf16.mxu0 %v770
        %984 = vmatpush2.bf16.msra.mxu0 %v769
        %985 = vmatprep.mubr.bf16.mxu0 %v343
        %986 = vmatmul.mubr.bf16.gmra.mxu0 %v342
        %v987 = vpop.f32.mrf.mxu0
        %v988 = vadd.f32 %v452, %v987
        %v989 = vpop.f32.mrf.mxu0
        %v990 = vadd.f32 %v456, %v989
        %v991 = vpop.f32.mrf.mxu0
        %v992 = vadd.f32 %v452, %v991
        %v993 = vpop.f32.mrf.mxu0
        %v994 = vadd.f32 %v456, %v993
        %995 = vdwg.mxu0
        %996 = vmatprep.subr.bf16.mxu0 %v800
        %997 = vmatpush1.bf16.msra.mxu0 %v799
        %998 = vmatprep.subr.bf16.mxu0 %v798
        %999 = vmatpush1.bf16.msra.mxu0 %v797
        %1000 = vmatprep.subr.bf16.mxu0 %v796
        %1001 = vmatpush1.bf16.msra.mxu0 %v795
        %1002 = vmatprep.subr.bf16.mxu0 %v794
        %1003 = vmatpush1.bf16.msra.mxu0 %v793
        %1004 = vmatprep.subr.bf16.mxu0 %v792
        %1005 = vmatpush1.bf16.msra.mxu0 %v791
        %1006 = vmatprep.subr.bf16.mxu0 %v790
        %1007 = vmatpush1.bf16.msra.mxu0 %v789
        %1008 = vmatprep.subr.bf16.mxu0 %v788
        %1009 = vmatpush1.bf16.msra.mxu0 %v787
        %1010 = vmatprep.subr.bf16.mxu0 %v786
        %1011 = vmatpush1.bf16.msra.mxu0 %v785
        %1012 = vmatprep.subr.bf16.mxu0 %v816
        %1013 = vmatpush2.bf16.msra.mxu0 %v815
        %1014 = vmatprep.subr.bf16.mxu0 %v814
        %1015 = vmatpush2.bf16.msra.mxu0 %v813
        %1016 = vmatprep.subr.bf16.mxu0 %v812
        %1017 = vmatpush2.bf16.msra.mxu0 %v811
        %1018 = vmatprep.subr.bf16.mxu0 %v810
        %1019 = vmatpush2.bf16.msra.mxu0 %v809
        %1020 = vmatprep.subr.bf16.mxu0 %v808
        %1021 = vmatpush2.bf16.msra.mxu0 %v807
        %1022 = vmatprep.subr.bf16.mxu0 %v806
        %1023 = vmatpush2.bf16.msra.mxu0 %v805
        %1024 = vmatprep.subr.bf16.mxu0 %v804
        %1025 = vmatpush2.bf16.msra.mxu0 %v803
        %1026 = vmatprep.subr.bf16.mxu0 %v802
        %1027 = vmatpush2.bf16.msra.mxu0 %v801
        %1028 = vmatprep.mubr.bf16.mxu0 %v345
        %1029 = vmatmul.mubr.bf16.gmra.mxu0 %v344
        %v1030 = vpop.f32.mrf.mxu0
        %v1031 = vadd.f32 %v988, %v1030
        %v1032 = vpop.f32.mrf.mxu0
        %v1033 = vadd.f32 %v990, %v1032
        %v1034 = vpop.f32.mrf.mxu0
        %v1035 = vadd.f32 %v992, %v1034
        %v1036 = vpop.f32.mrf.mxu0
        %v1037 = vadd.f32 %v994, %v1036
        %1038 = vdwg.mxu0
        %1039 = vmatprep.subr.bf16.mxu0 %v832
        %1040 = vmatpush1.bf16.msra.mxu0 %v831
        %1041 = vmatprep.subr.bf16.mxu0 %v830
        %1042 = vmatpush1.bf16.msra.mxu0 %v829
        %1043 = vmatprep.subr.bf16.mxu0 %v828
        %1044 = vmatpush1.bf16.msra.mxu0 %v827
        %1045 = vmatprep.subr.bf16.mxu0 %v826
        %1046 = vmatpush1.bf16.msra.mxu0 %v825
        %1047 = vmatprep.subr.bf16.mxu0 %v824
        %1048 = vmatpush1.bf16.msra.mxu0 %v823
        %1049 = vmatprep.subr.bf16.mxu0 %v822
        %1050 = vmatpush1.bf16.msra.mxu0 %v821
        %1051 = vmatprep.subr.bf16.mxu0 %v820
        %1052 = vmatpush1.bf16.msra.mxu0 %v819
        %1053 = vmatprep.subr.bf16.mxu0 %v818
        %1054 = vmatpush1.bf16.msra.mxu0 %v817
        %1055 = vmatprep.subr.bf16.mxu0 %v848
        %1056 = vmatpush2.bf16.msra.mxu0 %v847
        %1057 = vmatprep.subr.bf16.mxu0 %v846
        %1058 = vmatpush2.bf16.msra.mxu0 %v845
        %1059 = vmatprep.subr.bf16.mxu0 %v844
        %1060 = vmatpush2.bf16.msra.mxu0 %v843
        %1061 = vmatprep.subr.bf16.mxu0 %v842
        %1062 = vmatpush2.bf16.msra.mxu0 %v841
        %1063 = vmatprep.subr.bf16.mxu0 %v840
        %1064 = vmatpush2.bf16.msra.mxu0 %v839
        %1065 = vmatprep.subr.bf16.mxu0 %v838
        %1066 = vmatpush2.bf16.msra.mxu0 %v837
        %1067 = vmatprep.subr.bf16.mxu0 %v836
        %1068 = vmatpush2.bf16.msra.mxu0 %v835
        %1069 = vmatprep.subr.bf16.mxu0 %v834
        %1070 = vmatpush2.bf16.msra.mxu0 %v833
        %1071 = vmatprep.mubr.bf16.mxu0 %v347
        %1072 = vmatmul.mubr.bf16.gmra.mxu0 %v346
        %v1073 = vpop.f32.mrf.mxu0
        %v1074 = vadd.f32 %v1031, %v1073
        %v1075 = vpop.f32.mrf.mxu0
        %v1076 = vadd.f32 %v1033, %v1075
        %v1077 = vpop.f32.mrf.mxu0
        %v1078 = vadd.f32 %v1035, %v1077
        %v1079 = vpop.f32.mrf.mxu0
        %v1080 = vadd.f32 %v1037, %v1079
        %1081 = vdwg.mxu0
        %1082 = vmatprep.subr.bf16.mxu0 0
        %1083 = vmatpush1.bf16.msra.mxu0 0
        %1084 = vmatprep.subr.bf16.mxu0 0
        %1085 = vmatpush1.bf16.msra.mxu0 0
        %1086 = vmatprep.subr.bf16.mxu0 0
        %1087 = vmatpush1.bf16.msra.mxu0 0
        %1088 = vmatprep.subr.bf16.mxu0 0
        %1089 = vmatpush1.bf16.msra.mxu0 0
        %1090 = vmatprep.subr.bf16.mxu0 0
        %1091 = vmatpush1.bf16.msra.mxu0 0
        %1092 = vmatprep.subr.bf16.mxu0 0
        %1093 = vmatpush1.bf16.msra.mxu0 0
        %1094 = vmatprep.subr.bf16.mxu0 0
        %1095 = vmatpush1.bf16.msra.mxu0 0
        %1096 = vmatprep.subr.bf16.mxu0 %v850
        %1097 = vmatpush1.bf16.msra.mxu0 %v849
        %1098 = vmatprep.subr.bf16.mxu0 0
        %1099 = vmatpush2.bf16.msra.mxu0 0
        %1100 = vmatprep.subr.bf16.mxu0 0
        %1101 = vmatpush2.bf16.msra.mxu0 0
        %1102 = vmatprep.subr.bf16.mxu0 0
        %1103 = vmatpush2.bf16.msra.mxu0 0
        %1104 = vmatprep.subr.bf16.mxu0 0
        %1105 = vmatpush2.bf16.msra.mxu0 0
        %1106 = vmatprep.subr.bf16.mxu0 0
        %1107 = vmatpush2.bf16.msra.mxu0 0
        %1108 = vmatprep.subr.bf16.mxu0 0
        %1109 = vmatpush2.bf16.msra.mxu0 0
        %1110 = vmatprep.subr.bf16.mxu0 0
        %1111 = vmatpush2.bf16.msra.mxu0 0
        %1112 = vmatprep.subr.bf16.mxu0 0
        %1113 = vmatpush2.bf16.msra.mxu0 0
        %1114 = vmatprep.mubr.bf16.mxu0 0
        %1115 = vmatmul.mubr.bf16.gmra.mxu0 %v951
        %v1116 = vpop.f32.mrf.mxu0
        %v1117 = vadd.f32 %v1074, %v1116
        %v1118 = vpop.f32.mrf.mxu0
        %v1119 = vadd.f32 %v1076, %v1118
        %v1120 = vpop.f32.mrf.mxu0
        %v1121 = vadd.f32 %v1078, %v1120
        %v1122 = vpop.f32.mrf.mxu0
        %v1123 = vadd.f32 %v1080, %v1122
        %1124 = vdwg.mxu0
        %v1125 = vmax.f32 %v1117, 0.0
        %v1126 = vmax.f32 %v1119, 0.0
        %v1127 = vmax.f32 %v1121, 0.0
        %v1128 = vmax.f32 %v1123, 0.0
        %v1129 = vpack.c.bf16 %v1127, %v1125
        %v1130 = vpack.c.bf16 %v1128, %v1126
        %v1131 = vld [vmem:[%s3] sm:$0xf]
        %v1132 = vld [vmem:[%s3 + $0x4] sm:$0xf]
        %v1133 = vld [vmem:[%s3 + $0x8] sm:$0xf]
        %v1134 = vld [vmem:[%s3 + $0xc] sm:$0xf]
        %v1135 = vld [vmem:[%s3 + $0x10] sm:$0xf]
        %v1136 = vld [vmem:[%s3 + $0x14] sm:$0xf]
        %v1137 = vld [vmem:[%s3 + $0x18] sm:$0xf]
        %v1138 = vld [vmem:[%s3 + $0x1c] sm:$0xf]
        %v1139 = vld [vmem:[%s3 + $0x20] sm:$0xf]
        %v1140 = vld [vmem:[%s3 + $0x24] sm:$0xf]
        %v1141 = vld [vmem:[%s3 + $0x28] sm:$0xf]
        %v1142 = vld [vmem:[%s3 + $0x2c] sm:$0xf]
        %v1143 = vld [vmem:[%s3 + $0x30] sm:$0xf]
        %v1144 = vld [vmem:[%s3 + $0x34] sm:$0xf]
        %v1145 = vld [vmem:[%s3 + $0x38] sm:$0xf]
        %v1146 = vld [vmem:[%s3 + $0x3c] sm:$0xf]
        %v1147 = vld [vmem:[%s3 + $0x40] sm:$0xf]
        %v1148 = vld [vmem:[%s3 + $0x44] sm:$0xf]
        %v1149 = vld [vmem:[%s3 + $0x48] sm:$0xf]
        %v1150 = vld [vmem:[%s3 + $0x4c] sm:$0xf]
        %v1151 = vld [vmem:[%s3 + $0x50] sm:$0xf]
        %v1152 = vld [vmem:[%s3 + $0x54] sm:$0xf]
        %v1153 = vld [vmem:[%s3 + $0x58] sm:$0xf]
        %v1154 = vld [vmem:[%s3 + $0x5c] sm:$0xf]
        %v1155 = vld [vmem:[%s3 + $0x60] sm:$0xf]
        %v1156 = vld [vmem:[%s3 + $0x64] sm:$0xf]
        %v1157 = vld [vmem:[%s3 + $0x68] sm:$0xf]
        %v1158 = vld [vmem:[%s3 + $0x6c] sm:$0xf]
        %v1159 = vld [vmem:[%s3 + $0x70] sm:$0xf]
        %v1160 = vld [vmem:[%s3 + $0x74] sm:$0xf]
        %v1161 = vld [vmem:[%s3 + $0x78] sm:$0xf]
        %v1162 = vld [vmem:[%s3 + $0x7c] sm:$0xf]
        %v1163 = vld [vmem:[%s4] sm:$0x1]
        %v1165 = vlaneseq
        %v1166 = vshrl.u32 %v1165, 7
        %v1167 = vsub.s32 0, %v1166
        %v1168 = vrot.slane %v1163, %v1167
        %v1202 = vunpack.c.l.b16 %v1131
        %v1203 = vunpack.c.l.b16 %v1132
        %v1204 = vunpack.c.l.b16 %v1133
        %v1205 = vunpack.c.l.b16 %v1134
        %v1206 = vunpack.c.l.b16 %v1135
        %v1207 = vunpack.c.l.b16 %v1136
        %v1208 = vunpack.c.l.b16 %v1137
        %v1209 = vunpack.c.l.b16 %v1138
        %v1210 = vunpack.c.l.b16 %v1139
        %v1211 = vunpack.c.l.b16 %v1140
        %v1212 = vunpack.c.l.b16 %v1141
        %v1213 = vunpack.c.l.b16 %v1142
        %v1214 = vunpack.c.l.b16 %v1143
        %v1215 = vunpack.c.l.b16 %v1144
        %v1216 = vunpack.c.l.b16 %v1145
        %v1217 = vunpack.c.l.b16 %v1146
        %v1218 = vunpack.c.l.b16 %v1147
        %v1219 = vunpack.c.l.b16 %v1148
        %v1220 = vunpack.c.l.b16 %v1149
        %v1221 = vunpack.c.l.b16 %v1150
        %v1222 = vunpack.c.l.b16 %v1151
        %v1223 = vunpack.c.l.b16 %v1152
        %v1224 = vunpack.c.l.b16 %v1153
        %v1225 = vunpack.c.l.b16 %v1154
        %v1226 = vunpack.c.l.b16 %v1155
        %v1227 = vunpack.c.l.b16 %v1156
        %v1228 = vunpack.c.l.b16 %v1157
        %v1229 = vunpack.c.l.b16 %v1158
        %v1230 = vunpack.c.l.b16 %v1159
        %v1231 = vunpack.c.l.b16 %v1160
        %v1232 = vunpack.c.l.b16 %v1161
        %v1233 = vunpack.c.l.b16 %v1162
        %v1234 = vpack.c.b16 %v1203, %v1202
        %v1235 = vpack.c.b16 %v1205, %v1204
        %v1236 = vpack.c.b16 %v1207, %v1206
        %v1237 = vpack.c.b16 %v1209, %v1208
        %v1238 = vpack.c.b16 %v1211, %v1210
        %v1239 = vpack.c.b16 %v1213, %v1212
        %v1240 = vpack.c.b16 %v1215, %v1214
        %v1241 = vpack.c.b16 %v1217, %v1216
        %v1242 = vpack.c.b16 %v1219, %v1218
        %v1243 = vpack.c.b16 %v1221, %v1220
        %v1244 = vpack.c.b16 %v1223, %v1222
        %v1245 = vpack.c.b16 %v1225, %v1224
        %v1246 = vpack.c.b16 %v1227, %v1226
        %v1247 = vpack.c.b16 %v1229, %v1228
        %v1248 = vpack.c.b16 %v1231, %v1230
        %v1249 = vpack.c.b16 %v1233, %v1232
        %1266 = vmatprep.subr.bf16.mxu0 0
        %1267 = vmatpush1.bf16.msra.mxu0 %v1241
        %1268 = vmatprep.subr.bf16.mxu0 0
        %1269 = vmatpush1.bf16.msra.mxu0 %v1240
        %1270 = vmatprep.subr.bf16.mxu0 0
        %1271 = vmatpush1.bf16.msra.mxu0 %v1239
        %1272 = vmatprep.subr.bf16.mxu0 0
        %1273 = vmatpush1.bf16.msra.mxu0 %v1238
        %1274 = vmatprep.subr.bf16.mxu0 0
        %1275 = vmatpush1.bf16.msra.mxu0 %v1237
        %1276 = vmatprep.subr.bf16.mxu0 0
        %1277 = vmatpush1.bf16.msra.mxu0 %v1236
        %1278 = vmatprep.subr.bf16.mxu0 0
        %1279 = vmatpush1.bf16.msra.mxu0 %v1235
        %1280 = vmatprep.subr.bf16.mxu0 0
        %1281 = vmatpush1.bf16.msra.mxu0 %v1234
        %1282 = vmatprep.subr.bf16.mxu0 0
        %1283 = vmatpush2.bf16.msra.mxu0 %v1249
        %1284 = vmatprep.subr.bf16.mxu0 0
        %1285 = vmatpush2.bf16.msra.mxu0 %v1248
        %1286 = vmatprep.subr.bf16.mxu0 0
        %1287 = vmatpush2.bf16.msra.mxu0 %v1247
        %1288 = vmatprep.subr.bf16.mxu0 0
        %1289 = vmatpush2.bf16.msra.mxu0 %v1246
        %1290 = vmatprep.subr.bf16.mxu0 0
        %1291 = vmatpush2.bf16.msra.mxu0 %v1245
        %1292 = vmatprep.subr.bf16.mxu0 0
        %1293 = vmatpush2.bf16.msra.mxu0 %v1244
        %1294 = vmatprep.subr.bf16.mxu0 0
        %1295 = vmatpush2.bf16.msra.mxu0 %v1243
        %1296 = vmatprep.subr.bf16.mxu0 0
        %1297 = vmatpush2.bf16.msra.mxu0 %v1242
        %1298 = vmatprep.mubr.bf16.mxu0 %v1130
        %1299 = vmatmul.mubr.bf16.gmra.mxu0 %v1129
        %v1300 = vpop.f32.mrf.mxu0
        %v1301 = vadd.f32 %v1168, %v1300
        %v1302 = vpop.f32.mrf.mxu0
        %v1303 = vpop.f32.mrf.mxu0
        %v1304 = vadd.f32 %v1168, %v1303
        %v1305 = vpop.f32.mrf.mxu0
        %1306 = vdwg.mxu0
        %v1307 = vmax.f32 %v1301, 0.0
        %v1308 = vmax.f32 %v1304, 0.0
        %v1309 = vld [vmem:[%s5] sm:$0xff]
        %v1310 = vld [vmem:[%s5 + $0x8] sm:$0xff]
        %v1311 = vld [vmem:[%s5 + $0x10] sm:$0xff]
        %v1312 = vld [vmem:[%s5 + $0x18] sm:$0xff]
        %v1313 = vld [vmem:[%s5 + $0x20] sm:$0xff]
        %v1314 = vld [vmem:[%s5 + $0x28] sm:$0xff]
        %v1315 = vld [vmem:[%s5 + $0x30] sm:$0xff]
        %v1316 = vld [vmem:[%s5 + $0x38] sm:$0xff]
        %v1317 = vld [vmem:[%s6] sm:$0x1]
        %v1319 = vlaneseq
        %v1320 = vshrl.u32 %v1319, 7
        %v1321 = vsub.s32 0, %v1320
        %v1322 = vrot.slane %v1317, %v1321
        %vm1324 = vcmask 523264
        %v1326 = vsel %vm1324, %v1307, 0
        %v1329 = vsel %vm1324, %v1308, 0
        %1331 = vmatprep.subr.mxu0 0.0
        %1332 = vmatpush1.msra.mxu0 0.0
        %1333 = vmatprep.subr.mxu0 0.0
        %1334 = vmatpush1.msra.mxu0 0.0
        %1335 = vmatprep.subr.mxu0 0.0
        %1336 = vmatpush1.msra.mxu0 0.0
        %1337 = vmatprep.subr.mxu0 0.0
        %1338 = vmatpush1.msra.mxu0 0.0
        %1339 = vmatprep.subr.mxu0 0.0
        %1340 = vmatpush1.msra.mxu0 0.0
        %1341 = vmatprep.subr.mxu0 0.0
        %1342 = vmatpush1.msra.mxu0 0.0
        %1343 = vmatprep.subr.mxu0 0.0
        %1344 = vmatpush1.msra.mxu0 0.0
        %1345 = vmatprep.subr.mxu0 0.0
        %1346 = vmatpush1.msra.mxu0 0.0
        %1347 = vmatprep.subr.mxu0 0.0
        %1348 = vmatpush1.msra.mxu0 %v1316
        %1349 = vmatprep.subr.mxu0 0.0
        %1350 = vmatpush1.msra.mxu0 %v1315
        %1351 = vmatprep.subr.mxu0 0.0
        %1352 = vmatpush1.msra.mxu0 %v1314
        %1353 = vmatprep.subr.mxu0 0.0
        %1354 = vmatpush1.msra.mxu0 %v1313
        %1355 = vmatprep.subr.mxu0 0.0
        %1356 = vmatpush1.msra.mxu0 %v1312
        %1357 = vmatprep.subr.mxu0 0.0
        %1358 = vmatpush1.msra.mxu0 %v1311
        %1359 = vmatprep.subr.mxu0 0.0
        %1360 = vmatpush1.msra.mxu0 %v1310
        %1361 = vmatprep.subr.mxu0 0.0
        %1362 = vmatpush1.msra.mxu0 %v1309
        %1363 = vmatprep.subr.mxu0 0.0
        %1364 = vmatpush2.msra.mxu0 0.0
        %1365 = vmatprep.subr.mxu0 0.0
        %1366 = vmatpush2.msra.mxu0 0.0
        %1367 = vmatprep.subr.mxu0 0.0
        %1368 = vmatpush2.msra.mxu0 0.0
        %1369 = vmatprep.subr.mxu0 0.0
        %1370 = vmatpush2.msra.mxu0 0.0
        %1371 = vmatprep.subr.mxu0 0.0
        %1372 = vmatpush2.msra.mxu0 0.0
        %1373 = vmatprep.subr.mxu0 0.0
        %1374 = vmatpush2.msra.mxu0 0.0
        %1375 = vmatprep.subr.mxu0 0.0
        %1376 = vmatpush2.msra.mxu0 0.0
        %1377 = vmatprep.subr.mxu0 0.0
        %1378 = vmatpush2.msra.mxu0 0.0
        %1379 = vmatprep.subr.mxu0 0.0
        %1380 = vmatpush2.msra.mxu0 0.0
        %1381 = vmatprep.subr.mxu0 0.0
        %1382 = vmatpush2.msra.mxu0 0.0
        %1383 = vmatprep.subr.mxu0 0.0
        %1384 = vmatpush2.msra.mxu0 0.0
        %1385 = vmatprep.subr.mxu0 0.0
        %1386 = vmatpush2.msra.mxu0 0.0
        %1387 = vmatprep.subr.mxu0 0.0
        %1388 = vmatpush2.msra.mxu0 0.0
        %1389 = vmatprep.subr.mxu0 0.0
        %1390 = vmatpush2.msra.mxu0 0.0
        %1391 = vmatprep.subr.mxu0 0.0
        %1392 = vmatpush2.msra.mxu0 0.0
        %1393 = vmatprep.subr.mxu0 0.0
        %1394 = vmatpush2.msra.mxu0 0.0
        %1395 = vmatprep.mubr.f32.mxu0 0.0
        %1396 = vmatmul.mubr.f32.gmra.mxu0 %v1326
        %v1397 = vpop.f32.mrf.mxu0
        %v1398 = vadd.f32 %v1322, %v1397
        %v1399 = vpop.f32.mrf.mxu0
        %1400 = vmatprep.mubr.f32.mxu0 0.0
        %1401 = vmatmul.mubr.f32.gmra.mxu0 %v1329
        %v1402 = vpop.f32.mrf.mxu0
        %v1403 = vadd.f32 %v1322, %v1402
        %v1404 = vpop.f32.mrf.mxu0
        %1405 = vdwg.mxu0
        %vm1406 = vcmask 80896
        %1407 = vst.msk [vmem:[%s315] sm:$0xff] %vm1406, %v1398
        %1408 = vst.msk [vmem:[%s315 + $0x8] sm:$0xff] %vm1406, %v1403
        %s1409 = sand.u32 %s182, 1
        %s1410 = sand.u32 %s182, 1
        %s1411 = smul.addr %s1410, 16
        %s1412 = scalar_lea.vmem [#allocation6], %s1411
        // Predicated region
        $region57: #{tpu_custom_call.1} parent=47 // pred_check
          %p1413 = pneg %p192
        $region58: #{tpu_custom_call.1} parent=47 // pred_check_branch
          %1415 = sbr.rel (%p1413) target = $region60
        $region59: #{tpu_custom_call.1} parent=47 // pred_region
          %s1416 = smul.u32 2, %s22
          %s1417 = ssub.s32 5, %s1416
          %p1418 = scmp.lt.s32.totalorder %s1417, 2
          %s1419 = scalar_select %p1418, %s1417, 2
          %s1420 = smul.u32 128, %s1419
          %p1421 = scmp.ne.s32.totalorder 0, %s1420
          %s1422 = smul.addr %s1416, 8
          %s1423 = scalar_lea.vmem %s7, %s1422
          // Predicated region
          $region61: #{tpu_custom_call.1} parent=59 // pred_check
            %p1424 = pneg %p1421
          $region62: #{tpu_custom_call.1} parent=59 // pred_check_branch
            %1426 = sbr.rel (%p1424) target = $region64
          $region63: #{tpu_custom_call.1} parent=59 // pred_region
            // Predicated region
            $region65: #{tpu_custom_call.1} parent=63 // pred_check
              _
            $region66: #{tpu_custom_call.1} parent=63 // pred_check_branch
              %1428 = sbr.rel (0) target = $region68
            $region67: #{tpu_custom_call.1} parent=63 // pred_region
              // Predicated region
              $region87: #{tpu_custom_call.1} parent=67 // pred_check
                _
              $region88: #{tpu_custom_call.1} parent=67 // pred_check_branch
                %1480 = sbr.rel (0) target = $region90
              $region89: #{tpu_custom_call.1} parent=67 // pred_region
                %s1481 = sshrl.u32 %s1419, 1
                // While loop
                $region91: #{tpu_custom_call.1} parent=89 // loop_pre_header
                  _
                $region92: #{tpu_custom_call.1} parent=89 // loop_header
                  %s1483 = sphi 0, %s1485
                  %p1484 = scmp.ge.s32.totalorder %s1483, %s1481
                  %s1488 = sphi 0, %s1497
                  %s1489 = sphi %s1412, %s1500
                  %s1490 = sphi %s1423, %s1501
                $region93: #{tpu_custom_call.1} parent=89 // loop_header_branch
                  %1487 = sbr.rel (%p1484) target = $region97
                $region94: #{tpu_custom_call.1} parent=89 // loop_body
                  %v1491 = vld [vmem:[%s1489] sm:$0xff]
                  %1492 = vst [vmem:[%s1490] sm:$0xff] %v1491
                  %v1493 = vld [vmem:[%s1489 + $0x8] sm:$0xff]
                  %1494 = vst [vmem:[%s1490 + $0x8] sm:$0xff] %v1493
                  %s1495 = sadd.s32 1, %s1488
                  %p1496 = scmp.ge.s32.totalorder %s1495, %s1481
                  %s1497 = scalar_select %p1496, 0, %s1495
                  %s1498 = smul.u32 %s1497, 16
                  %s1499 = smul.u32 %s1497, 16
                  %s1500 = scalar_lea.vmem %s1412, %s1498 [#allocation6]
                  %s1501 = scalar_lea.vmem %s1423, %s1499
                $region95: #{tpu_custom_call.1} parent=89 // loop_footer
                  %s1485 = sadd.s32 %s1483, 1
                $region96: #{tpu_custom_call.1} parent=89 // loop_footer_branch
                  %1482 = sbr.rel target = $region92
                $region97: #{tpu_custom_call.1} parent=89 // loop_exit
                  _
                %s1502 = sshrl.u32 %s1419, 1
                %s1503 = sand.u32 %s1419, 1
                %s1504 = smul.u32 %s1502, 2
                %s1505 = smul.u32 8, %s1504
                %s1506 = scalar_lea.vmem %s1412, %s1505 [#allocation6]
                %s1507 = smul.u32 8, %s1504
                %s1508 = scalar_lea.vmem %s1423, %s1507
                // While loop
                $region98: #{tpu_custom_call.1} parent=89 // loop_pre_header
                  _
                $region99: #{tpu_custom_call.1} parent=89 // loop_header
                  %s1510 = sphi 0, %s1512
                  %p1511 = scmp.ge.s32.totalorder %s1510, %s1503
                  %s1515 = sphi 0, %s1522
                  %s1516 = sphi %s1506, %s1525
                  %s1517 = sphi %s1508, %s1526
                $region100: #{tpu_custom_call.1} parent=89 // loop_header_branch
                  %1514 = sbr.rel (%p1511) target = $region104
                $region101: #{tpu_custom_call.1} parent=89 // loop_body
                  %v1518 = vld [vmem:[%s1516] sm:$0xff]
                  %1519 = vst [vmem:[%s1517] sm:$0xff] %v1518
                  %s1520 = sadd.s32 1, %s1515
                  %p1521 = scmp.ge.s32.totalorder %s1520, %s1503
                  %s1522 = scalar_select %p1521, 0, %s1520
                  %s1523 = smul.u32 %s1522, 8
                  %s1524 = smul.u32 %s1522, 8
                  %s1525 = scalar_lea.vmem %s1506, %s1523 [#allocation6]
                  %s1526 = scalar_lea.vmem %s1508, %s1524
                $region102: #{tpu_custom_call.1} parent=89 // loop_footer
                  %s1512 = sadd.s32 %s1510, 1
                $region103: #{tpu_custom_call.1} parent=89 // loop_footer_branch
                  %1509 = sbr.rel target = $region99
                $region104: #{tpu_custom_call.1} parent=89 // loop_exit
                  _
              $region90: #{tpu_custom_call.1} parent=67 // pred_fallthru
                _
              // Predicated region
              $region105: #{tpu_custom_call.1} parent=67 // pred_check
                _
              $region106: #{tpu_custom_call.1} parent=67 // pred_check_branch
                %1528 = sbr.rel target = $region108
              $region107: #{tpu_custom_call.1} parent=67 // pred_region
                _
              $region108: #{tpu_custom_call.1} parent=67 // pred_fallthru
                _
            $region68: #{tpu_custom_call.1} parent=63 // pred_fallthru
              _
            // Predicated region
            $region69: #{tpu_custom_call.1} parent=63 // pred_check
              _
            $region70: #{tpu_custom_call.1} parent=63 // pred_check_branch
              %1430 = sbr.rel target = $region72
            $region71: #{tpu_custom_call.1} parent=63 // pred_region
              %s1432 = ssub.s32 256, 1
              %s1433 = sshrl.u32 %s1419, 1
              // While loop
              $region73: #{tpu_custom_call.1} parent=71 // loop_pre_header
                _
              $region74: #{tpu_custom_call.1} parent=71 // loop_header
                %s1435 = sphi 0, %s1437
                %p1436 = scmp.ge.s32.totalorder %s1435, %s1433
                %s1440 = sphi 0, %s1449
                %s1441 = sphi %s1412, %s1452
                %s1442 = sphi %s1423, %s1453
              $region75: #{tpu_custom_call.1} parent=71 // loop_header_branch
                %1439 = sbr.rel (%p1436) target = $region79
              $region76: #{tpu_custom_call.1} parent=71 // loop_body
                %v1443 = vld [vmem:[%s1441] sm:%s1432]
                %1444 = vst [vmem:[%s1442] sm:%s1432] %v1443
                %v1445 = vld [vmem:[%s1441 + $0x8] sm:%s1432]
                %1446 = vst [vmem:[%s1442 + $0x8] sm:%s1432] %v1445
                %s1447 = sadd.s32 1, %s1440
                %p1448 = scmp.ge.s32.totalorder %s1447, %s1433
                %s1449 = scalar_select %p1448, 0, %s1447
                %s1450 = smul.u32 %s1449, 16
                %s1451 = smul.u32 %s1449, 16
                %s1452 = scalar_lea.vmem %s1412, %s1450 [#allocation6]
                %s1453 = scalar_lea.vmem %s1423, %s1451
              $region77: #{tpu_custom_call.1} parent=71 // loop_footer
                %s1437 = sadd.s32 %s1435, 1
              $region78: #{tpu_custom_call.1} parent=71 // loop_footer_branch
                %1434 = sbr.rel target = $region74
              $region79: #{tpu_custom_call.1} parent=71 // loop_exit
                _
              %s1454 = sshrl.u32 %s1419, 1
              %s1455 = sand.u32 %s1419, 1
              %s1456 = smul.u32 %s1454, 2
              %s1457 = smul.u32 8, %s1456
              %s1458 = scalar_lea.vmem %s1412, %s1457 [#allocation6]
              %s1459 = smul.u32 8, %s1456
              %s1460 = scalar_lea.vmem %s1423, %s1459
              // While loop
              $region80: #{tpu_custom_call.1} parent=71 // loop_pre_header
                _
              $region81: #{tpu_custom_call.1} parent=71 // loop_header
                %s1462 = sphi 0, %s1464
                %p1463 = scmp.ge.s32.totalorder %s1462, %s1455
                %s1467 = sphi 0, %s1474
                %s1468 = sphi %s1458, %s1477
                %s1469 = sphi %s1460, %s1478
              $region82: #{tpu_custom_call.1} parent=71 // loop_header_branch
                %1466 = sbr.rel (%p1463) target = $region86
              $region83: #{tpu_custom_call.1} parent=71 // loop_body
                %v1470 = vld [vmem:[%s1468] sm:%s1432]
                %1471 = vst [vmem:[%s1469] sm:%s1432] %v1470
                %s1472 = sadd.s32 1, %s1467
                %p1473 = scmp.ge.s32.totalorder %s1472, %s1455
                %s1474 = scalar_select %p1473, 0, %s1472
                %s1475 = smul.u32 %s1474, 8
                %s1476 = smul.u32 %s1474, 8
                %s1477 = scalar_lea.vmem %s1458, %s1475 [#allocation6]
                %s1478 = scalar_lea.vmem %s1460, %s1476
              $region84: #{tpu_custom_call.1} parent=71 // loop_footer
                %s1464 = sadd.s32 %s1462, 1
              $region85: #{tpu_custom_call.1} parent=71 // loop_footer_branch
                %1461 = sbr.rel target = $region81
              $region86: #{tpu_custom_call.1} parent=71 // loop_exit
                _
            $region72: #{tpu_custom_call.1} parent=63 // pred_fallthru
              _
          $region64: #{tpu_custom_call.1} parent=59 // pred_fallthru
            _
          %1529 = vnop
        $region60: #{tpu_custom_call.1} parent=47 // pred_fallthru
          _
      $region48: #{tpu_custom_call.1} parent=5 // pred_fallthru
        _
      %p1530 = scmp.le.s32.totalorder 2, %s17
      // Predicated region
      $region109: #{tpu_custom_call.1} parent=5 // pred_check
        %p1531 = pneg %p1530
      $region110: #{tpu_custom_call.1} parent=5 // pred_check_branch
        %1533 = sbr.rel (%p1531) target = $region112
      $region111: #{tpu_custom_call.1} parent=5 // pred_region
        %s1534 = ssub.s32 %s17, 2
        // Predicated region
        $region113: #{tpu_custom_call.1} parent=111 // pred_check
          %p1535 = pneg %p198
        $region114: #{tpu_custom_call.1} parent=111 // pred_check_branch
          %1537 = sbr.rel (%p1535) target = $region116
        $region115: #{tpu_custom_call.1} parent=111 // pred_region
          %s1538 = sand.u32 %s183, 1
          %s1539 = sand.u32 %s183, 1
          %s1540 = smul.addr %s1539, 16
          %s1541 = scalar_lea.vmem [#allocation6], %s1540
        $region116: #{tpu_custom_call.1} parent=111 // pred_fallthru
          _
      $region112: #{tpu_custom_call.1} parent=5 // pred_fallthru
        _
    $region6: #{tpu_custom_call.1} parent=1 // loop_footer
      %s21 = sadd.s32 1, %s17
    $region7: #{tpu_custom_call.1} parent=1 // loop_footer_branch
      %16 = sbr.rel target = $region3
    $region8: #{tpu_custom_call.1} parent=1 // loop_exit
      _
    %1542 = vsyncpa [#allocation3], 1
    %s1543 = scalar_lea.sflag [#allocation3], 1
    %1544 = vsyncpa %s1543, 1
    %1545 = vsyncpa [#allocation5], 1

</llo_original>
